<compile_context>
chip_gen: v6e
topology: v6e:2x2x1
jax: 0.10.0
libtpu: 0.0.40
codegen_flags: <defaults>
</compile_context>

<pallas_src>
import jax
import jax.numpy as jnp
from jax import lax
from jax.experimental import pallas as pl
from jax.experimental.pallas import tpu as pltpu

ALPHA = 0.7
BETA = 0.3
SMOOTH = 1e-6

LANES = 128
# Combined HBM bytes (both inputs) streamed per grid step.  f32+f32 -> 4096
# rows (2 MiB per input block); double-buffered = 8 MiB VMEM total.
TARGET_STEP_BYTES = 4 * 1024 * 1024


def _round_up(v, m):
    return ((v + m - 1) // m) * m


def _min_sublane(dtype):
    # min sublane tile: f32 -> 8, bf16 -> 16, int8/bool/fp8 -> 32
    return max(8, 32 // jnp.dtype(dtype).itemsize)


def _tensorcores_per_chip():
    # 2 TensorCores per chip on v7x; 1 on v5e/v6e.  Fall back to 1 if unknown.
    try:
        kind = jax.devices()[0].device_kind.lower().replace(" ", "")
    except Exception:
        return 1
    return 2 if ("v7" in kind or "tpu7" in kind) else 1


def _build_kernel(n, inner, num_blocks, row_tile, lanes):
    """Kernel closure over static problem constants (no scalar prefetch)."""
    block_elems = row_tile * lanes
    last = num_blocks - 1
    tail_count = n - last * block_elems          # python int in [1, block_elems]
    tail_is_full = (tail_count == block_elems)

    def kernel(logits_ref, targets_ref, out_ref):
        c = pl.program_id(0)          # core / parallel axis
        i = pl.program_id(1)          # streaming (reduction) axis

        # zero this core's resident partial-sum block at its first step
        @pl.when(i == 0)
        def _():
            out_ref[...] = jnp.zeros_like(out_ref)

        x = logits_ref[...].astype(jnp.float32)
        t = targets_ref[...].astype(jnp.float32)
        p = jax.nn.sigmoid(x)

        def _accum(pv, tv):
            pt = pv * tv
            # Fold (row_tile,128) -> (8,128) with pure vreg adds (VPU, no
            # XLU), accumulating into the VMEM-resident output block.
            out_ref[0, 0, :, :] += pt.reshape(-1, 8, lanes).sum(axis=0)
            out_ref[0, 1, :, :] += pv.reshape(-1, 8, lanes).sum(axis=0)
            out_ref[0, 2, :, :] += tv.reshape(-1, 8, lanes).sum(axis=0)

        blk = c * inner + i           # small ints; no int32-overflow risk

        @pl.when(blk < last)
        def _():
            _accum(p, t)

        if tail_is_full:
            @pl.when(blk == last)
            def _():
                _accum(p, t)
        else:
            @pl.when(blk == last)
            def _():
                # Tail block: mask local offsets past the static valid count
                # (covers both the 128-pad and any partial-block OOB rows).
                row = lax.broadcasted_iota(jnp.int32, (row_tile, lanes), 0)
                col = lax.broadcasted_iota(jnp.int32, (row_tile, lanes), 1)
                valid = (row * lanes + col) < tail_count
                _accum(jnp.where(valid, p, 0.0), jnp.where(valid, t, 0.0))
        # blk > last (overflow step on a 2-core grid with odd num_blocks):
        # falls through both branches — no accumulation.

    return kernel


def tversky_loss(logits, targets, alpha=ALPHA, beta=BETA, smooth=SMOOTH):
    """Pallas TPU implementation of TverskyLoss.forward (returns a scalar)."""
    assert logits.shape == targets.shape
    n = int(logits.size)
    if n == 0:
        # TP = FP = FN = 0  ->  1 - smooth/smooth = 0
        return jnp.asarray(0.0, dtype=jnp.float32)

    flat_l = logits.reshape(-1)
    flat_t = targets.reshape(-1)

    # Only pad (copy) when the flat length is not a multiple of 128; padded
    # values are irrelevant because the tail block is masked in-kernel.
    pad = (-n) % LANES
    if pad:
        flat_l = jnp.pad(flat_l, (0, pad))
        flat_t = jnp.pad(flat_t, (0, pad))
    rows = (n + pad) // LANES

    l_item = jnp.dtype(flat_l.dtype).itemsize
    t_item = jnp.dtype(flat_t.dtype).itemsize
    sub = max(_min_sublane(flat_l.dtype), _min_sublane(flat_t.dtype))

    # dtype-aware tile: keep ~TARGET_STEP_BYTES of HBM traffic per grid step,
    # rounded down to the packed sublane multiple (>= sub).
    row_tile_max = max(
        sub, (TARGET_STEP_BYTES // (LANES * (l_item + t_item))) // sub * sub)
    row_tile = min(row_tile_max, _round_up(rows, sub))

    num_blocks = pl.cdiv(rows, row_tile)
    num_cores = min(_tensorcores_per_chip(), num_blocks)
    inner = pl.cdiv(num_blocks, num_cores)

    l2d = flat_l.reshape(rows, LANES)
    t2d = flat_t.reshape(rows, LANES)

    if num_cores * inner == num_blocks:
        def in_idx(c, i):
            return (c * inner + i, 0)
    else:
        # Clamp overflow steps to a valid block (fully skipped in-kernel).
        def in_idx(c, i):
            return (jnp.minimum(c * inner + i, num_blocks - 1), 0)

    def out_idx(c, i):
        return (c, 0, 0, 0)

    kernel = _build_kernel(n, inner, num_blocks, row_tile, LANES)

    bytes_accessed = n * (l_item + t_item) + num_cores * 3 * 8 * LANES * 4

    partial = pl.pallas_call(
        kernel,
        out_shape=jax.ShapeDtypeStruct((num_cores, 3, 8, LANES), jnp.float32),
        grid_spec=pltpu.PrefetchScalarGridSpec(
            num_scalar_prefetch=0,
            grid=(num_cores, inner),
            in_specs=[
                pl.BlockSpec((row_tile, LANES), in_idx),
                pl.BlockSpec((row_tile, LANES), in_idx),
            ],
            out_specs=pl.BlockSpec((1, 3, 8, LANES), out_idx),
        ),
        compiler_params=pltpu.CompilerParams(
            dimension_semantics=("parallel", "arbitrary")),
        cost_estimate=pl.CostEstimate(
            flops=6 * n, transcendentals=n, bytes_accessed=bytes_accessed),
    )(l2d, t2d)

    # Tiny (num_cores, 3, 8, 128) reduction + Tversky ratio in the wrapper.
    # FP/FN are derived algebraically (FP = sum(p) - sum(p*t),
    # FN = sum(t) - sum(p*t)); for near-all-ones/zeros targets these are
    # differences of large f32 partials — slightly less accurate than the
    # reference's direct sum((1-t)*p), but the effect on the final ratio is
    # negligible since TP dominates the denominator.
    sums = jnp.sum(partial, axis=(0, 2, 3))      # [sum(p*t), sum(p), sum(t)]
    tp = sums[0]
    fp = sums[1] - sums[0]
    fn = sums[2] - sums[0]
    return 1.0 - (tp + smooth) / (tp + alpha * fp + beta * fn + smooth)


def _tversky_ref(logits, targets):
    p = jax.nn.sigmoid(logits.astype(jnp.float32))
    t = targets.astype(jnp.float32)
    TP = jnp.sum(p * t)
    FP = jnp.sum((1.0 - t) * p)
    FN = jnp.sum(t * (1.0 - p))
    return 1.0 - (TP + SMOOTH) / (TP + ALPHA * FP + BETA * FN + SMOOTH)


if __name__ == "__main__":
    key = jax.random.PRNGKey(0)
    k1, k2, k3, k4 = jax.random.split(key, 4)

    # shapes consistent with a segmentation-style loss input: NCHW
    logits = jax.random.normal(k1, (2, 4, 16, 16), dtype=jnp.float32)
    targets = (jax.random.uniform(k2, (2, 4, 16, 16)) > 0.5).astype(jnp.float32)

    loss = tversky_loss(logits, targets)
    jax.block_until_ready(loss)
    ref = _tversky_ref(logits, targets)
    assert jnp.allclose(loss, ref, atol=1e-5, rtol=1e-5), (loss, ref)

    # second small case with a ragged element count (exercises the masked tail)
    logits2 = jax.random.normal(k3, (3, 5, 7, 11), dtype=jnp.float32)
    targets2 = (jax.random.uniform(k4, (3, 5, 7, 11)) > 0.5).astype(jnp.float32)
    loss2 = tversky_loss(logits2, targets2)
    jax.block_until_ready(loss2)
    ref2 = _tversky_ref(logits2, targets2)
    assert jnp.allclose(loss2, ref2, atol=1e-5, rtol=1e-5), (loss2, ref2)

    print("KERNEL_OK")
</pallas_src>

<mosaic_0001>
module attributes {stable_mosaic.version = 11 : i64} {
  func.func @kernel(%arg0: i32, %arg1: i32, %arg2: memref<16x128xf32, #tpu.memory_space<vmem>>, %arg3: memref<16x128xf32, #tpu.memory_space<vmem>>, %arg4: memref<1x3x8x128xf32, #tpu.memory_space<vmem>>) attributes {dimension_semantics = [#tpu.dimension_semantics<parallel>, #tpu.dimension_semantics<arbitrary>], iteration_bounds = array<i64: 1, 1>, scalar_prefetch = 0 : i64, scratch_operands = 0 : i64, tpu.core_type = #tpu.core_type<tc>, window_params = [{transform_indices = @transform_0, window_bounds = array<i64: 16, 128>}, {transform_indices = @transform_1, window_bounds = array<i64: 16, 128>}, {transform_indices = @transform_2, window_bounds = array<i64: 1, 3, 8, 128>}]} {
    %c0_i32 = arith.constant 0 : i32
    %0 = arith.cmpi eq, %arg1, %c0_i32 : i32
    %1 = arith.extui %0 : i1 to i32
    %c0_i32_0 = arith.constant 0 : i32
    %2 = arith.cmpi ne, %1, %c0_i32_0 : i32
    scf.if %2 {
      %cst_8 = arith.constant 0.000000e+00 : f32
      %18 = vector.broadcast %cst_8 : f32 to vector<1x3x8x128xf32>
      %c0_9 = arith.constant 0 : index
      %c0_10 = arith.constant 0 : index
      %c0_11 = arith.constant 0 : index
      %c0_12 = arith.constant 0 : index
      %19 = vector.load %arg4[%c0_9, %c0_10, %c0_11, %c0_12] : memref<1x3x8x128xf32, #tpu.memory_space<vmem>>, vector<1x3x8x128xf32>
      tpu.vector_store %arg4[%c0_9, %c0_10, %c0_11, %c0_12], %18 {strides = array<i32>} : memref<1x3x8x128xf32, #tpu.memory_space<vmem>>, vector<1x3x8x128xf32>,
    } else {
    }
    %c0 = arith.constant 0 : index
    %c0_1 = arith.constant 0 : index
    %3 = vector.load %arg2[%c0, %c0_1] : memref<16x128xf32, #tpu.memory_space<vmem>>, vector<16x128xf32>
    %c0_2 = arith.constant 0 : index
    %c0_3 = arith.constant 0 : index
    %4 = vector.load %arg3[%c0_2, %c0_3] : memref<16x128xf32, #tpu.memory_space<vmem>>, vector<16x128xf32>
    %5 = arith.negf %3 : vector<16x128xf32>
    %6 = math.exp %5 : vector<16x128xf32>
    %cst = arith.constant 1.000000e+00 : f32
    %7 = vector.broadcast %cst : f32 to vector<16x128xf32>
    %8 = arith.addf %7, %6 : vector<16x128xf32>
    %9 = arith.divf %7, %8 : vector<16x128xf32>
    %c1_i32 = arith.constant 1 : i32
    %10 = arith.muli %arg0, %c1_i32 : i32
    %11 = arith.addi %10, %arg1 : i32
    %c0_i32_4 = arith.constant 0 : i32
    %12 = arith.cmpi slt, %11, %c0_i32_4 : i32
    %13 = arith.extui %12 : i1 to i32
    %c0_i32_5 = arith.constant 0 : i32
    %14 = arith.cmpi ne, %13, %c0_i32_5 : i32
    scf.if %14 {
      %18 = arith.mulf %9, %4 : vector<16x128xf32>
      %c0_8 = arith.constant 0 : index
      %c0_9 = arith.constant 0 : index
      %c0_10 = arith.constant 0 : index
      %c0_11 = arith.constant 0 : index
      %19 = vector.load %arg4[%c0_8, %c0_9, %c0_10, %c0_11] : memref<1x3x8x128xf32, #tpu.memory_space<vmem>>, vector<1x1x8x128xf32>
      %20 = vector.shape_cast %19 : vector<1x1x8x128xf32> to vector<8x128xf32>
      %21 = vector.shape_cast %18 : vector<16x128xf32> to vector<2x8x128xf32>
      %cst_12 = arith.constant dense<0.000000e+00> : vector<8x128xf32>
      %22 = vector.multi_reduction <add>, %21, %cst_12 [0] : vector<2x8x128xf32> to vector<8x128xf32>
      %23 = arith.addf %20, %22 : vector<8x128xf32>
      %c0_13 = arith.constant 0 : index
      %c0_14 = arith.constant 0 : index
      %c0_15 = arith.constant 0 : index
      %c0_16 = arith.constant 0 : index
      %24 = vector.load %arg4[%c0_13, %c0_14, %c0_15, %c0_16] : memref<1x3x8x128xf32, #tpu.memory_space<vmem>>, vector<1x1x8x128xf32>
      %25 = vector.shape_cast %24 : vector<1x1x8x128xf32> to vector<8x128xf32>
      %26 = vector.shape_cast %23 : vector<8x128xf32> to vector<1x1x8x128xf32>
      tpu.vector_store %arg4[%c0_13, %c0_14, %c0_15, %c0_16], %26 {strides = array<i32>} : memref<1x3x8x128xf32, #tpu.memory_space<vmem>>, vector<1x1x8x128xf32>,
      %c0_17 = arith.constant 0 : index
      %c1 = arith.constant 1 : index
      %c0_18 = arith.constant 0 : index
      %c0_19 = arith.constant 0 : index
      %27 = vector.load %arg4[%c0_17, %c1, %c0_18, %c0_19] : memref<1x3x8x128xf32, #tpu.memory_space<vmem>>, vector<1x1x8x128xf32>
      %28 = vector.shape_cast %27 : vector<1x1x8x128xf32> to vector<8x128xf32>
      %29 = vector.shape_cast %9 : vector<16x128xf32> to vector<2x8x128xf32>
      %cst_20 = arith.constant dense<0.000000e+00> : vector<8x128xf32>
      %30 = vector.multi_reduction <add>, %29, %cst_20 [0] : vector<2x8x128xf32> to vector<8x128xf32>
      %31 = arith.addf %28, %30 : vector<8x128xf32>
      %c0_21 = arith.constant 0 : index
      %c1_22 = arith.constant 1 : index
      %c0_23 = arith.constant 0 : index
      %c0_24 = arith.constant 0 : index
      %32 = vector.load %arg4[%c0_21, %c1_22, %c0_23, %c0_24] : memref<1x3x8x128xf32, #tpu.memory_space<vmem>>, vector<1x1x8x128xf32>
      %33 = vector.shape_cast %32 : vector<1x1x8x128xf32> to vector<8x128xf32>
      %34 = vector.shape_cast %31 : vector<8x128xf32> to vector<1x1x8x128xf32>
      tpu.vector_store %arg4[%c0_21, %c1_22, %c0_23, %c0_24], %34 {strides = array<i32>} : memref<1x3x8x128xf32, #tpu.memory_space<vmem>>, vector<1x1x8x128xf32>,
      %c0_25 = arith.constant 0 : index
      %c2 = arith.constant 2 : index
      %c0_26 = arith.constant 0 : index
      %c0_27 = arith.constant 0 : index
      %35 = vector.load %arg4[%c0_25, %c2, %c0_26, %c0_27] : memref<1x3x8x128xf32, #tpu.memory_space<vmem>>, vector<1x1x8x128xf32>
      %36 = vector.shape_cast %35 : vector<1x1x8x128xf32> to vector<8x128xf32>
      %37 = vector.shape_cast %4 : vector<16x128xf32> to vector<2x8x128xf32>
      %cst_28 = arith.constant dense<0.000000e+00> : vector<8x128xf32>
      %38 = vector.multi_reduction <add>, %37, %cst_28 [0] : vector<2x8x128xf32> to vector<8x128xf32>
      %39 = arith.addf %36, %38 : vector<8x128xf32>
      %c0_29 = arith.constant 0 : index
      %c2_30 = arith.constant 2 : index
      %c0_31 = arith.constant 0 : index
      %c0_32 = arith.constant 0 : index
      %40 = vector.load %arg4[%c0_29, %c2_30, %c0_31, %c0_32] : memref<1x3x8x128xf32, #tpu.memory_space<vmem>>, vector<1x1x8x128xf32>
      %41 = vector.shape_cast %40 : vector<1x1x8x128xf32> to vector<8x128xf32>
      %42 = vector.shape_cast %39 : vector<8x128xf32> to vector<1x1x8x128xf32>
      tpu.vector_store %arg4[%c0_29, %c2_30, %c0_31, %c0_32], %42 {strides = array<i32>} : memref<1x3x8x128xf32, #tpu.memory_space<vmem>>, vector<1x1x8x128xf32>,
    } else {
    }
    %c0_i32_6 = arith.constant 0 : i32
    %15 = arith.cmpi eq, %11, %c0_i32_6 : i32
    %16 = arith.extui %15 : i1 to i32
    %c0_i32_7 = arith.constant 0 : i32
    %17 = arith.cmpi ne, %16, %c0_i32_7 : i32
    scf.if %17 {
      %18 = arith.mulf %9, %4 : vector<16x128xf32>
      %c0_8 = arith.constant 0 : index
      %c0_9 = arith.constant 0 : index
      %c0_10 = arith.constant 0 : index
      %c0_11 = arith.constant 0 : index
      %19 = vector.load %arg4[%c0_8, %c0_9, %c0_10, %c0_11] : memref<1x3x8x128xf32, #tpu.memory_space<vmem>>, vector<1x1x8x128xf32>
      %20 = vector.shape_cast %19 : vector<1x1x8x128xf32> to vector<8x128xf32>
      %21 = vector.shape_cast %18 : vector<16x128xf32> to vector<2x8x128xf32>
      %cst_12 = arith.constant dense<0.000000e+00> : vector<8x128xf32>
      %22 = vector.multi_reduction <add>, %21, %cst_12 [0] : vector<2x8x128xf32> to vector<8x128xf32>
      %23 = arith.addf %20, %22 : vector<8x128xf32>
      %c0_13 = arith.constant 0 : index
      %c0_14 = arith.constant 0 : index
      %c0_15 = arith.constant 0 : index
      %c0_16 = arith.constant 0 : index
      %24 = vector.load %arg4[%c0_13, %c0_14, %c0_15, %c0_16] : memref<1x3x8x128xf32, #tpu.memory_space<vmem>>, vector<1x1x8x128xf32>
      %25 = vector.shape_cast %24 : vector<1x1x8x128xf32> to vector<8x128xf32>
      %26 = vector.shape_cast %23 : vector<8x128xf32> to vector<1x1x8x128xf32>
      tpu.vector_store %arg4[%c0_13, %c0_14, %c0_15, %c0_16], %26 {strides = array<i32>} : memref<1x3x8x128xf32, #tpu.memory_space<vmem>>, vector<1x1x8x128xf32>,
      %c0_17 = arith.constant 0 : index
      %c1 = arith.constant 1 : index
      %c0_18 = arith.constant 0 : index
      %c0_19 = arith.constant 0 : index
      %27 = vector.load %arg4[%c0_17, %c1, %c0_18, %c0_19] : memref<1x3x8x128xf32, #tpu.memory_space<vmem>>, vector<1x1x8x128xf32>
      %28 = vector.shape_cast %27 : vector<1x1x8x128xf32> to vector<8x128xf32>
      %29 = vector.shape_cast %9 : vector<16x128xf32> to vector<2x8x128xf32>
      %cst_20 = arith.constant dense<0.000000e+00> : vector<8x128xf32>
      %30 = vector.multi_reduction <add>, %29, %cst_20 [0] : vector<2x8x128xf32> to vector<8x128xf32>
      %31 = arith.addf %28, %30 : vector<8x128xf32>
      %c0_21 = arith.constant 0 : index
      %c1_22 = arith.constant 1 : index
      %c0_23 = arith.constant 0 : index
      %c0_24 = arith.constant 0 : index
      %32 = vector.load %arg4[%c0_21, %c1_22, %c0_23, %c0_24] : memref<1x3x8x128xf32, #tpu.memory_space<vmem>>, vector<1x1x8x128xf32>
      %33 = vector.shape_cast %32 : vector<1x1x8x128xf32> to vector<8x128xf32>
      %34 = vector.shape_cast %31 : vector<8x128xf32> to vector<1x1x8x128xf32>
      tpu.vector_store %arg4[%c0_21, %c1_22, %c0_23, %c0_24], %34 {strides = array<i32>} : memref<1x3x8x128xf32, #tpu.memory_space<vmem>>, vector<1x1x8x128xf32>,
      %c0_25 = arith.constant 0 : index
      %c2 = arith.constant 2 : index
      %c0_26 = arith.constant 0 : index
      %c0_27 = arith.constant 0 : index
      %35 = vector.load %arg4[%c0_25, %c2, %c0_26, %c0_27] : memref<1x3x8x128xf32, #tpu.memory_space<vmem>>, vector<1x1x8x128xf32>
      %36 = vector.shape_cast %35 : vector<1x1x8x128xf32> to vector<8x128xf32>
      %37 = vector.shape_cast %4 : vector<16x128xf32> to vector<2x8x128xf32>
      %cst_28 = arith.constant dense<0.000000e+00> : vector<8x128xf32>
      %38 = vector.multi_reduction <add>, %37, %cst_28 [0] : vector<2x8x128xf32> to vector<8x128xf32>
      %39 = arith.addf %36, %38 : vector<8x128xf32>
      %c0_29 = arith.constant 0 : index
      %c2_30 = arith.constant 2 : index
      %c0_31 = arith.constant 0 : index
      %c0_32 = arith.constant 0 : index
      %40 = vector.load %arg4[%c0_29, %c2_30, %c0_31, %c0_32] : memref<1x3x8x128xf32, #tpu.memory_space<vmem>>, vector<1x1x8x128xf32>
      %41 = vector.shape_cast %40 : vector<1x1x8x128xf32> to vector<8x128xf32>
      %42 = vector.shape_cast %39 : vector<8x128xf32> to vector<1x1x8x128xf32>
      tpu.vector_store %arg4[%c0_29, %c2_30, %c0_31, %c0_32], %42 {strides = array<i32>} : memref<1x3x8x128xf32, #tpu.memory_space<vmem>>, vector<1x1x8x128xf32>,
    } else {
    }
    return
  }
  func.func @transform_0(%arg0: i32, %arg1: i32) -> (i32, i32) {
    %c1_i32 = arith.constant 1 : i32
    %0 = arith.muli %arg0, %c1_i32 : i32
    %1 = arith.addi %0, %arg1 : i32
    %c0_i32 = arith.constant 0 : i32
    %c0_i32_0 = arith.constant 0 : i32
    return %1, %c0_i32 : i32, i32
  }
  func.func @transform_1(%arg0: i32, %arg1: i32) -> (i32, i32) {
    %c1_i32 = arith.constant 1 : i32
    %0 = arith.muli %arg0, %c1_i32 : i32
    %1 = arith.addi %0, %arg1 : i32
    %c0_i32 = arith.constant 0 : i32
    %c0_i32_0 = arith.constant 0 : i32
    return %1, %c0_i32 : i32, i32
  }
  func.func @transform_2(%arg0: i32, %arg1: i32) -> (i32, i32, i32, i32) {
    %c0_i32 = arith.constant 0 : i32
    %c0_i32_0 = arith.constant 0 : i32
    %c0_i32_1 = arith.constant 0 : i32
    %c0_i32_2 = arith.constant 0 : i32
    return %arg0, %c0_i32, %c0_i32_0, %c0_i32_1 : i32, i32, i32, i32
  }
}

</mosaic_0001>

<llo_original>
// kernel: tpu_custom_call.1
$region0: #{tpu_custom_call.1}
  #allocation0 [shape = 'u32[]', space=smem, size = 0x4, offset = 0x4, fixed_abs, tag = 'smem constant byte address 0x4 - core index']
  #allocation1 [shape = 'u32[144,128]{1,0:T(1,128)}', space=vmem, size = 0x12000, scoped, tag = 'internal scratch']
  %s0 = inlined_call_operand.hbm [shape: f32[16,128], index: 0, kind: input, shape index: {}]
  %s1 = inlined_call_operand.hbm [shape: f32[16,128], index: 1, kind: input, shape index: {}]
  %s2 = inlined_call_operand.hbm [shape: f32[1,3,8,128], index: 2, kind: output, shape index: {}]
  %s3 = sld [smem:[#allocation0]]
  $region38: #{tpu_custom_call.1} parent=0
    _
  %s5 = ssub.s32 1, %s3
  %s6 = scalar_select 0, %s5, %s3
  $region1: #{tpu_custom_call.1} parent=0
    #allocation2 [shape = 'u8[8192]{0}', space=vmem, size = 0x2000, scoped, tag = 'input window, operand 0, single buffered']
    #allocation3 [shape = 's32[1]{0}', space=sflag, size = 0x4, scoped, tag = 'scoped memory for tpu_custom_call.1']
    #allocation4 [shape = 's32[1]{0}', space=sflag, size = 0x4, scoped, tag = 'scoped memory for tpu_custom_call.1']
    #allocation5 [shape = 'u8[8192]{0}', space=vmem, size = 0x2000, scoped, tag = 'input window, operand 1, single buffered']
    #allocation6 [shape = 's32[1]{0}', space=sflag, size = 0x4, scoped, tag = 'scoped memory for tpu_custom_call.1']
    #allocation7 [shape = 'u8[12288]{0}', space=vmem, size = 0x3000, scoped, tag = 'output window, operand 0, single buffered']
    %7 = vsyncpa [#allocation3], 0
    %8 = vsyncpa [#allocation6], 0
    %9 = vsyncpa [#allocation4], 0
    // Predicated region
    $region2: #{tpu_custom_call.1} parent=1 // pred_check
      _
    $region3: #{tpu_custom_call.1} parent=1 // pred_check_branch
      %11 = sbr.rel (0) target = $region5
    $region4: #{tpu_custom_call.1} parent=1 // pred_region
      %s12 = sadd.s32 0, 0
      %s13 = smul.u32 2, %s12
      %s15 = ssub.s32 256, 256
      %16 = vsyncadd [#allocation3], %s15
      %s17 = smul.addr %s13, 128
      %s18 = scalar_lea.hbm %s0, %s17
      %s19 = sshll.u32 [#allocation2], 4
      %s20 = int_to_ptr.vmem [resolvable:$true] %s19
      %25 = dma.hbm_to_vmem [thread:$0]  %s18, 256, %s20, [#allocation3], 128, 128, 8
    $region5: #{tpu_custom_call.1} parent=1 // pred_fallthru
      _
    // Predicated region
    $region6: #{tpu_custom_call.1} parent=1 // pred_check
      _
    $region7: #{tpu_custom_call.1} parent=1 // pred_check_branch
      %27 = sbr.rel (0) target = $region9
    $region8: #{tpu_custom_call.1} parent=1 // pred_region
      %s28 = sadd.s32 0, 0
      %s29 = smul.u32 2, %s28
      %s31 = ssub.s32 256, 256
      %32 = vsyncadd [#allocation6], %s31
      %s33 = smul.addr %s29, 128
      %s34 = scalar_lea.hbm %s1, %s33
      %s35 = sshll.u32 [#allocation5], 4
      %s36 = int_to_ptr.vmem [resolvable:$true] %s35
      %41 = dma.hbm_to_vmem [thread:$0]  %s34, 256, %s36, [#allocation6], 128, 128, 8
    $region9: #{tpu_custom_call.1} parent=1 // pred_fallthru
      _
    // Predicated region
    $region10: #{tpu_custom_call.1} parent=1 // pred_check
      _
    $region11: #{tpu_custom_call.1} parent=1 // pred_check_branch
      %43 = sbr.rel (0) target = $region13
    $region12: #{tpu_custom_call.1} parent=1 // pred_region
      %44 = dma.done [#allocation3], 256
    $region13: #{tpu_custom_call.1} parent=1 // pred_fallthru
      _
    // Predicated region
    $region14: #{tpu_custom_call.1} parent=1 // pred_check
      _
    $region15: #{tpu_custom_call.1} parent=1 // pred_check_branch
      %46 = sbr.rel (0) target = $region17
    $region16: #{tpu_custom_call.1} parent=1 // pred_region
      %47 = dma.done [#allocation6], 256
    $region17: #{tpu_custom_call.1} parent=1 // pred_fallthru
      _
    %s48 = sadd.s32 0, 0
    %s49 = smul.u32 2, %s48
    %s50 = sadd.s32 0, 0
    %s51 = smul.u32 2, %s50
    %p52 = scmp.eq.s32.totalorder 0, 0
    // Predicated region
    $region18: #{tpu_custom_call.1} parent=1 // pred_check
      %p53 = pneg %p52
    $region19: #{tpu_custom_call.1} parent=1 // pred_check_branch
      %55 = sbr.rel (%p53) target = $region21
    $region20: #{tpu_custom_call.1} parent=1 // pred_region
      %56 = vst [vmem:[#allocation7] sm:$0xff] 0.0
      %57 = vst [vmem:[#allocation7 + $0x8] sm:$0xff] 0.0
      %58 = vst [vmem:[#allocation7 + $0x10] sm:$0xff] 0.0
    $region21: #{tpu_custom_call.1} parent=1 // pred_fallthru
      _
    %v59 = vld [vmem:[#allocation2] sm:$0xff]
    %v60 = vld [vmem:[#allocation2 + $0x8] sm:$0xff]
    %v61 = vld [vmem:[#allocation5] sm:$0xff]
    %v62 = vld [vmem:[#allocation5 + $0x8] sm:$0xff]
    %v63 = vxor.u32 %v59, 2147483648
    %v64 = vxor.u32 %v60, 2147483648
    %v65 = vmul.f32 %v63, 1.442695
    %v66 = vpow.pop %v65
    %v67 = vmul.f32 %v64, 1.442695
    %v68 = vpow.pop %v67
    %v69 = vadd.f32 %v66, 1.0
    %v70 = vadd.f32 %v68, 1.0
    %v71 = vrcp.pop %v69
    %v72 = vmul.f32 1.0, %v71
    %v73 = vrcp.pop %v70
    %v74 = vmul.f32 1.0, %v73
    %s75 = sadd.s32 0, 0
    %p76 = scmp.lt.s32.totalorder %s75, 0
    // Predicated region
    $region22: #{tpu_custom_call.1} parent=1 // pred_check
      %p77 = pneg %p76
    $region23: #{tpu_custom_call.1} parent=1 // pred_check_branch
      %79 = sbr.rel (%p77) target = $region25
    $region24: #{tpu_custom_call.1} parent=1 // pred_region
      %v80 = vmul.f32 %v72, %v61
      %v81 = vmul.f32 %v74, %v62
      %v82 = vld [vmem:[#allocation7] sm:$0xff]
      %v83 = vadd.f32 %v80, %v81
      %v84 = vadd.f32 %v82, %v83
      %85 = vst [vmem:[#allocation7] sm:$0xff] %v84
      %s86 = scalar_lea.vmem [#allocation7], 8
      %v87 = vld [vmem:[%s86] sm:$0xff]
      %v88 = vadd.f32 %v72, %v74
      %v89 = vadd.f32 %v87, %v88
      %90 = vst [vmem:[%s86] sm:$0xff] %v89
      %s91 = scalar_lea.vmem [#allocation7], 16
      %v92 = vld [vmem:[%s91] sm:$0xff]
      %v93 = vadd.f32 %v61, %v62
      %v94 = vadd.f32 %v92, %v93
      %95 = vst [vmem:[%s91] sm:$0xff] %v94
    $region25: #{tpu_custom_call.1} parent=1 // pred_fallthru
      _
    %p96 = scmp.eq.s32.totalorder %s75, 0
    // Predicated region
    $region26: #{tpu_custom_call.1} parent=1 // pred_check
      %p97 = pneg %p96
    $region27: #{tpu_custom_call.1} parent=1 // pred_check_branch
      %99 = sbr.rel (%p97) target = $region29
    $region28: #{tpu_custom_call.1} parent=1 // pred_region
      %v100 = vmul.f32 %v72, %v61
      %v101 = vmul.f32 %v74, %v62
      %v102 = vld [vmem:[#allocation7] sm:$0xff]
      %v103 = vadd.f32 %v100, %v101
      %v104 = vadd.f32 %v102, %v103
      %105 = vst [vmem:[#allocation7] sm:$0xff] %v104
      %s106 = scalar_lea.vmem [#allocation7], 8
      %v107 = vld [vmem:[%s106] sm:$0xff]
      %v108 = vadd.f32 %v72, %v74
      %v109 = vadd.f32 %v107, %v108
      %110 = vst [vmem:[%s106] sm:$0xff] %v109
      %s111 = scalar_lea.vmem [#allocation7], 16
      %v112 = vld [vmem:[%s111] sm:$0xff]
      %v113 = vadd.f32 %v61, %v62
      %v114 = vadd.f32 %v112, %v113
      %115 = vst [vmem:[%s111] sm:$0xff] %v114
    $region29: #{tpu_custom_call.1} parent=1 // pred_fallthru
      _
    // Predicated region
    $region30: #{tpu_custom_call.1} parent=1 // pred_check
      _
    $region31: #{tpu_custom_call.1} parent=1 // pred_check_branch
      %117 = sbr.rel (0) target = $region33
    $region32: #{tpu_custom_call.1} parent=1 // pred_region
      %s119 = ssub.s32 384, 384
      %120 = vsyncadd [#allocation4], %s119
      %s121 = sshll.u32 [#allocation7], 4
      %s122 = int_to_ptr.vmem [resolvable:$true] %s121
      %127 = dma.vmem_to_hbm [thread:$0]  %s122, 384, %s2, [#allocation4], 128, 128, 8
    $region33: #{tpu_custom_call.1} parent=1 // pred_fallthru
      _
    // Predicated region
    $region34: #{tpu_custom_call.1} parent=1 // pred_check
      _
    $region35: #{tpu_custom_call.1} parent=1 // pred_check_branch
      %129 = sbr.rel (0) target = $region37
    $region36: #{tpu_custom_call.1} parent=1 // pred_region
      %130 = dma.done [#allocation4], 384
    $region37: #{tpu_custom_call.1} parent=1 // pred_fallthru
      _
    %131 = vsyncpa [#allocation3], 1
    %132 = vsyncpa [#allocation6], 1
    %133 = vsyncpa [#allocation4], 1

</llo_original>
